<compile_context>
chip_gen: v6e
topology: v6e:2x2x1
jax: 0.10.0
libtpu: 0.0.40
codegen_flags: <defaults>
</compile_context>

<pallas_src>
import jax
import jax.numpy as jnp
from jax.experimental import pallas as pl
from jax.experimental.pallas import tpu as pltpu


def _silu(x):
    return x * jax.nn.sigmoid(x)


def _round_up(x, m):
    return ((x + m - 1) // m) * m


def _vmem_capacity_bytes():
    try:
        return int(pltpu.get_tpu_info().vmem_capacity_bytes)
    except Exception:
        return 64 * 1024 * 1024            # conservative (v7x-sized) fallback


def _vmem_limit_bytes(cap):
    # ~75% of physical VMEM (48 MiB on v7x, 96 MiB on v5e/v6e), never below 32 MiB.
    return max(32 * 1024 * 1024, min(cap * 3 // 4, cap - 16 * 1024 * 1024))


def _choose_edge_tile(N, H, md_bytes):
    """Edge-tile rows for the post-fusion layout, sized from physical VMEM."""
    cap = _vmem_capacity_bytes()
    limit = _vmem_limit_bytes(cap)
    # resident: stacked RHS B [2N,H+3], weights/biases, partial-agg out block (x2)
    resident = 4 * (4 * N * (H + 3) + 3 * H * H + 8 * H)
    # per edge row: Rcat [tE,2N] + S_row [N,tE] in md, ~7 H-wide f32 activations,
    # narrow f32 vectors, 128-lane-padded (tE,2) index block (x2 pipeline bufs),
    # lane-dense row block.
    per_edge = 3 * N * md_bytes + 28 * H + 64 + 2 * 128 * 4 + 64
    per_edge = int(per_edge * 1.4)          # headroom for compiler temporaries
    budget = max(limit - resident, limit // 4)
    tE = (budget // per_edge) // 128 * 128
    cap_tiles = 8192 if cap >= 100 * 1024 * 1024 else 4096
    return int(max(128, min(cap_tiles, tE)))


def egcl_edge_kernel(rc_ref, row_lane_ref, B_ref,
                     We1r_ref, be1_ref, We2_ref, be2_ref,
                     Wc1_ref, bc1_ref, Wc2_ref,
                     agg_ref):
    f32 = jnp.float32
    md = B_ref.dtype                        # matmul-operand dtype (f32 or bf16)
    k = pl.program_id(1)                    # reduction axis (edge tiles per core)

    tE = rc_ref.shape[0]
    twoN = B_ref.shape[0]
    N = twoN // 2
    H = We2_ref.shape[0]

    one = jnp.array(1, dtype=md)
    zero = jnp.array(0, dtype=md)

    # ---- concatenated one-hot gather matrix [tE, 2N], built in matmul dtype --
    # Padded edges carry indices >= 2N -> all-zero rows, contributing nothing.
    row_c = rc_ref[:, 0:1]                                   # [tE,1] row index
    col_s = rc_ref[:, 1:2]                                   # [tE,1] col index + N
    iota_e = jax.lax.broadcasted_iota(jnp.int32, (tE, twoN), 1)
    Rcat = jnp.where((iota_e == row_c) | (iota_e == col_s), one, zero)

    # ---- ONE fused N-deep MXU pass: gather + coord_diff -----------------------
    # B = [[h@We1a ; +coord], [h@We1b ; -coord]]  ->  fused[:, :H] is the layer-1
    # gather term, fused[:, H:] is coord[row]-coord[col].
    fused = jnp.dot(Rcat, B_ref[...], preferred_element_type=f32)       # [tE,H+3]
    gath = fused[:, :H]
    coord_diff = fused[:, H:]

    # ---- coord2radial (f32; reciprocal on the EUP, approx=False) --------------
    radial = jnp.sum(coord_diff * coord_diff, axis=1, keepdims=True)    # [tE,1]
    inv = pl.reciprocal(jnp.sqrt(radial + 1e-8) + 1.0)
    coord_diff = coord_diff * inv

    # ---- edge model ------------------------------------------------------------
    pre1 = gath + radial * We1r_ref[...] + be1_ref[...]                 # rank-1 VPU term
    e1 = _silu(pre1)
    edge_feat = _silu(jnp.dot(e1.astype(md), We2_ref[...],
                              preferred_element_type=f32) + be2_ref[...])  # [tE,H]

    # ---- coord model -----------------------------------------------------------
    c1 = _silu(jnp.dot(edge_feat.astype(md), Wc1_ref[...],
                       preferred_element_type=f32) + bc1_ref[...])
    cw = jnp.dot(c1.astype(md), Wc2_ref[...], preferred_element_type=f32)  # [tE,1]
    trans = coord_diff * cw                                                # [tE,3]

    # ---- fused unsorted_segment_sum: ONE [N,tE] x [tE,H+3] MXU pass ------------
    cat = jnp.concatenate([edge_feat, trans], axis=1).astype(md)           # [tE,H+3]
    row_r = row_lane_ref[...]                                              # [1,tE]
    iota_n = jax.lax.broadcasted_iota(jnp.int32, (N, tE), 0)
    S_row = jnp.where(iota_n == row_r, one, zero)                          # [N,tE]
    # TODO(synk): replace S_row with a lhs-transposed dot_general over Rcat[:, :N]
    # once verified (pl.lower_as_mlir) that Mosaic lowers it without an XLU transpose.
    contrib = jnp.dot(S_row, cat, preferred_element_type=f32)              # [N,H+3]

    # ---- accumulate into this core's partial-aggregate output block -----------
    @pl.when(k == 0)
    def _():
        agg_ref[...] = jnp.zeros_like(agg_ref)
    agg_ref[...] += contrib[None]


def egcl_forward(params, h, edge_index, coord,
                 matmul_dtype=jnp.float32, edge_tile=None, core_split=2):
    f32 = jnp.float32
    md = jnp.dtype(matmul_dtype)
    prec = jax.lax.Precision.HIGHEST

    row, col = edge_index
    N, F = h.shape
    E = int(row.shape[0])
    H = params["We2"].shape[0]
    Hp3 = H + 3

    # ---- tiling / core-split decisions ----------------------------------------
    tE = int(edge_tile) if edge_tile is not None else _choose_edge_tile(N, H, md.itemsize)
    if E <= tE:
        tE = _round_up(max(E, 8), 8)       # single tile: pad to sublane multiple
        C, TPC = 1, 1
        E_pad = tE
    else:
        assert tE % 128 == 0, "multi-tile edge blocks must be multiples of 128"
        C = max(1, int(core_split))        # size-2 parallel axis -> 2 TCs on v7x
        E_pad = _round_up(E, tE * C)
        TPC = E_pad // (tE * C)

    # ---- edge indices: one packed [E_pad,2] block + one lane-dense row vector --
    row = row.astype(jnp.int32)
    col = col.astype(jnp.int32)
    pad = E_pad - E
    if pad:
        fill = jnp.full((pad,), 2 * N, jnp.int32)   # matches no iota -> zero one-hot rows
        row = jnp.concatenate([row, fill])
        col = jnp.concatenate([col, fill])
    rc = jnp.stack([row, col + N], axis=1)          # [E_pad, 2]; col pre-shifted by N
    row_lane = row.reshape(1, E_pad)                # [1, E_pad] lane-dense (scatter)

    # ---- hoisted precompute: stacked gather RHS [2N, H+3] ----------------------
    h = h.astype(f32)
    coord = coord.astype(f32)
    We1 = params["We1"].astype(f32)                 # [2F+1, H]
    gA = jnp.dot(h, We1[:F], precision=prec)        # h @ We1a
    gB = jnp.dot(h, We1[F:2 * F], precision=prec)   # h @ We1b
    B = jnp.concatenate(
        [jnp.concatenate([gA, coord], axis=1),
         jnp.concatenate([gB, -coord], axis=1)], axis=0).astype(md)      # [2N, H+3]
    We1r = We1[2 * F:2 * F + 1]                     # [1, H] radial rank-1 term (f32)

    inputs = (rc, row_lane, B,
              We1r, params["be1"].astype(f32),
              params["We2"].astype(md), params["be2"].astype(f32),
              params["Wc1"].astype(md), params["bc1"].astype(f32),
              params["Wc2"].astype(md))

    def _full_spec(a):
        nd = a.ndim
        return pl.BlockSpec(a.shape, lambda c, k, _n=nd: (0,) * _n)

    in_specs = [
        pl.BlockSpec((tE, 2), lambda c, k: (c * TPC + k, 0)),   # packed [row | col+N]
        pl.BlockSpec((1, tE), lambda c, k: (0, c * TPC + k)),   # lane-dense row
    ] + [_full_spec(a) for a in inputs[2:]]

    out_specs = pl.BlockSpec((1, N, Hp3), lambda c, k: (c, 0, 0))

    flops = int(2 * E_pad * 2 * N * Hp3             # fused gather + coord_diff
                + 2 * E_pad * H * (2 * H + 1)       # We2, Wc1, Wc2
                + 2 * E_pad * N * Hp3)              # fused scatter
    transcendentals = int(E_pad * (3 * H + 2))
    bytes_accessed = int(4 * 3 * E_pad + 4 * C * N * Hp3
                         + sum(jnp.dtype(a.dtype).itemsize * a.size
                               for a in inputs[2:]))

    partial = pl.pallas_call(
        egcl_edge_kernel,
        grid=(C, TPC),
        in_specs=in_specs,
        out_specs=out_specs,
        out_shape=jax.ShapeDtypeStruct((C, N, Hp3), f32),
        compiler_params=pltpu.CompilerParams(
            dimension_semantics=("parallel", "arbitrary"),
            vmem_limit_bytes=_vmem_limit_bytes(_vmem_capacity_bytes())),
        cost_estimate=pl.CostEstimate(flops=flops,
                                      transcendentals=transcendentals,
                                      bytes_accessed=bytes_accessed),
    )(*inputs)

    # ---- cross-core reduce + coord update + node MLP (tiny; plain XLA) ---------
    agg = jnp.sum(partial, axis=0)                  # [N, H+3]
    agg_edge, agg_trans = agg[:, :H], agg[:, H:]
    coord_out = coord + agg_trans
    node_in = jnp.concatenate([h, agg_edge], axis=1)
    n1 = _silu(jnp.dot(node_in, params["Wn1"].astype(f32), precision=prec)
               + params["bn1"].astype(f32))
    h_out = h + jnp.dot(n1, params["Wn2"].astype(f32), precision=prec) \
              + params["bn2"].astype(f32)
    return h_out, coord_out


def egcl_reference(params, h, edge_index, coord):
    """Pure-JAX replica of the PyTorch forward (for validation)."""
    row, col = edge_index
    coord_diff = coord[row] - coord[col]
    radial = jnp.sum(coord_diff ** 2, axis=1, keepdims=True)
    norm = jnp.sqrt(radial + 1e-8)
    coord_diff = coord_diff / (norm + 1.0)

    edge_in = jnp.concatenate([h[row], h[col], radial], axis=1)
    e1 = _silu(edge_in @ params["We1"] + params["be1"])
    edge_feat = _silu(e1 @ params["We2"] + params["be2"])

    c1 = _silu(edge_feat @ params["Wc1"] + params["bc1"])
    trans = coord_diff * (c1 @ params["Wc2"])

    N = h.shape[0]
    agg_trans = jax.ops.segment_sum(trans, row, num_segments=N)
    coord_out = coord + agg_trans
    agg_edge = jax.ops.segment_sum(edge_feat, row, num_segments=N)

    node_in = jnp.concatenate([h, agg_edge], axis=1)
    n1 = _silu(node_in @ params["Wn1"] + params["bn1"])
    out = n1 @ params["Wn2"] + params["bn2"]
    return h + out, coord_out


def init_params(key, input_nf, output_nf, hidden_nf):
    """Deterministic synthetic init mirroring the module's __init__ shapes."""
    input_edge = 2 * input_nf
    edge_coords_nf = 1
    ks = jax.random.split(key, 10)

    def lin(k, fan_in, fan_out, scale=None):
        s = scale if scale is not None else (1.0 / jnp.sqrt(fan_in))
        return s * jax.random.normal(k, (fan_in, fan_out), jnp.float32)

    return {
        # edge_mlp: Linear(2F+1, H) -> SiLU -> Linear(H, H) -> SiLU
        "We1": lin(ks[0], input_edge + edge_coords_nf, hidden_nf),
        "be1": 0.01 * jax.random.normal(ks[1], (1, hidden_nf), jnp.float32),
        "We2": lin(ks[2], hidden_nf, hidden_nf),
        "be2": 0.01 * jax.random.normal(ks[3], (1, hidden_nf), jnp.float32),
        # coord_mlp: Linear(H, H) -> SiLU -> Linear(H, 1, bias=False, gain=1e-3)
        "Wc1": lin(ks[4], hidden_nf, hidden_nf),
        "bc1": 0.01 * jax.random.normal(ks[5], (1, hidden_nf), jnp.float32),
        "Wc2": lin(ks[6], hidden_nf, 1, scale=0.001),
        # node_mlp: Linear(H+F, H) -> SiLU -> Linear(H, out)
        "Wn1": lin(ks[7], input_nf + hidden_nf, hidden_nf),
        "bn1": 0.01 * jax.random.normal(ks[8], (1, hidden_nf), jnp.float32),
        "Wn2": lin(ks[9], hidden_nf, output_nf),
        "bn2": jnp.zeros((1, output_nf), jnp.float32),
    }


def _fully_connected(n):
    idx = jnp.arange(n)
    rr, cc = jnp.meshgrid(idx, idx, indexing="ij")
    mask = rr != cc
    return rr[mask].astype(jnp.int32), cc[mask].astype(jnp.int32)


if __name__ == "__main__":
    F = 32         # input_nf == output_nf (recurrent residual requires equality)
    H = 32         # hidden_nf

    key = jax.random.PRNGKey(0)
    kp, kh, kc = jax.random.split(key, 3)
    params = init_params(kp, input_nf=F, output_nf=F, hidden_nf=H)

    # --- case 1: N=8 fully connected (E=56), single edge tile -----------------
    N = 8
    h = jax.random.normal(kh, (N, F), jnp.float32)
    coord = jax.random.normal(kc, (N, 3), jnp.float32)
    edge_index = _fully_connected(N)
    h_ref, coord_ref = egcl_reference(params, h, edge_index, coord)

    h_out, coord_out = egcl_forward(params, h, edge_index, coord,
                                    matmul_dtype=jnp.float32)
    jax.block_until_ready((h_out, coord_out))
    assert jnp.allclose(h_out, h_ref, rtol=1e-4, atol=1e-4), "h mismatch (f32)"
    assert jnp.allclose(coord_out, coord_ref, rtol=1e-4, atol=1e-4), "coord mismatch (f32)"

    # bf16 MXU operands, f32 accumulation: sanity tolerance only.
    h_bf, coord_bf = egcl_forward(params, h, edge_index, coord,
                                  matmul_dtype=jnp.bfloat16)
    jax.block_until_ready((h_bf, coord_bf))
    assert jnp.allclose(h_bf, h_ref, rtol=1e-1, atol=1e-1), "h mismatch (bf16)"
    assert jnp.allclose(coord_bf, coord_ref, rtol=1e-1, atol=1e-1), "coord mismatch (bf16)"

    # --- case 2: N=24 fully connected (E=552), forced tE=128, core_split=2 ----
    # Exercises multi-tile accumulation, edge padding, and the parallel core axis.
    N2 = 24
    h2 = jax.random.normal(jax.random.PRNGKey(1), (N2, F), jnp.float32)
    coord2 = jax.random.normal(jax.random.PRNGKey(2), (N2, 3), jnp.float32)
    ei2 = _fully_connected(N2)
    h2_ref, c2_ref = egcl_reference(params, h2, ei2, coord2)

    h2_out, c2_out = egcl_forward(params, h2, ei2, coord2,
                                  matmul_dtype=jnp.float32, edge_tile=128,
                                  core_split=2)
    jax.block_until_ready((h2_out, c2_out))
    assert jnp.allclose(h2_out, h2_ref, rtol=1e-4, atol=1e-4), "h mismatch (tiled)"
    assert jnp.allclose(c2_out, c2_ref, rtol=1e-4, atol=1e-4), "coord mismatch (tiled)"

    print("KERNEL_OK")
</pallas_src>

<mosaic_0001>
module attributes {stable_mosaic.version = 11 : i64} {
  func.func @egcl_edge_kernel(%arg0: i32, %arg1: i32, %arg2: memref<56x2xi32, #tpu.memory_space<vmem>>, %arg3: memref<1x56xi32, #tpu.memory_space<vmem>>, %arg4: memref<16x35xf32, #tpu.memory_space<vmem>>, %arg5: memref<1x32xf32, #tpu.memory_space<vmem>>, %arg6: memref<1x32xf32, #tpu.memory_space<vmem>>, %arg7: memref<32x32xf32, #tpu.memory_space<vmem>>, %arg8: memref<1x32xf32, #tpu.memory_space<vmem>>, %arg9: memref<32x32xf32, #tpu.memory_space<vmem>>, %arg10: memref<1x32xf32, #tpu.memory_space<vmem>>, %arg11: memref<32x1xf32, #tpu.memory_space<vmem>>, %arg12: memref<1x8x35xf32, #tpu.memory_space<vmem>>) attributes {dimension_semantics = [#tpu.dimension_semantics<parallel>, #tpu.dimension_semantics<arbitrary>], iteration_bounds = array<i64: 1, 1>, scalar_prefetch = 0 : i64, scratch_operands = 0 : i64, tpu.core_type = #tpu.core_type<tc>, window_params = [{transform_indices = @transform_0, window_bounds = array<i64: 56, 2>}, {transform_indices = @transform_1, window_bounds = array<i64: 1, 56>}, {pipeline_mode = #tpu.pipeline_mode<synchronous>, transform_indices = @transform_2, window_bounds = array<i64: 16, 35>}, {pipeline_mode = #tpu.pipeline_mode<synchronous>, transform_indices = @transform_3, window_bounds = array<i64: 1, 32>}, {pipeline_mode = #tpu.pipeline_mode<synchronous>, transform_indices = @transform_4, window_bounds = array<i64: 1, 32>}, {pipeline_mode = #tpu.pipeline_mode<synchronous>, transform_indices = @transform_5, window_bounds = array<i64: 32, 32>}, {pipeline_mode = #tpu.pipeline_mode<synchronous>, transform_indices = @transform_6, window_bounds = array<i64: 1, 32>}, {pipeline_mode = #tpu.pipeline_mode<synchronous>, transform_indices = @transform_7, window_bounds = array<i64: 32, 32>}, {pipeline_mode = #tpu.pipeline_mode<synchronous>, transform_indices = @transform_8, window_bounds = array<i64: 1, 32>}, {pipeline_mode = #tpu.pipeline_mode<synchronous>, transform_indices = @transform_9, window_bounds = array<i64: 32, 1>}, {transform_indices = @transform_10, window_bounds = array<i64: 1, 8, 35>}]} {
    %c0 = arith.constant 0 : index
    %c0_0 = arith.constant 0 : index
    %0 = vector.load %arg2[%c0, %c0_0] : memref<56x2xi32, #tpu.memory_space<vmem>>, vector<56x1xi32>
    %c0_1 = arith.constant 0 : index
    %c1 = arith.constant 1 : index
    %1 = vector.load %arg2[%c0_1, %c1] : memref<56x2xi32, #tpu.memory_space<vmem>>, vector<56x1xi32>
    %2 = tpu.iota {dimensions = array<i32: 1>} : vector<56x16xi32>
    %3 = vector.broadcast %0 : vector<56x1xi32> to vector<56x16xi32>
    %4 = arith.cmpi eq, %2, %3 : vector<56x16xi32>
    %5 = vector.broadcast %1 : vector<56x1xi32> to vector<56x16xi32>
    %6 = arith.cmpi eq, %2, %5 : vector<56x16xi32>
    %7 = arith.ori %4, %6 : vector<56x16xi1>
    %cst = arith.constant 1.000000e+00 : f32
    %cst_2 = arith.constant 0.000000e+00 : f32
    %8 = vector.broadcast %cst : f32 to vector<56x16xf32>
    %9 = vector.broadcast %cst_2 : f32 to vector<56x16xf32>
    %10 = arith.select %7, %8, %9 : vector<56x16xi1>, vector<56x16xf32>
    %c0_3 = arith.constant 0 : index
    %c0_4 = arith.constant 0 : index
    %11 = vector.load %arg4[%c0_3, %c0_4] : memref<16x35xf32, #tpu.memory_space<vmem>>, vector<16x35xf32>
    %cst_5 = arith.constant dense<0.000000e+00> : vector<56x35xf32>
    %12 = tpu.matmul %10, %11, %cst_5 {dimension_numbers = #tpu.dot_dimension_numbers<[1], [0], [0], [1], [0, 0, 1, 1], [], []>} : vector<56x16xf32>, vector<16x35xf32>, vector<56x35xf32> -> vector<56x35xf32>
    %13 = vector.extract_strided_slice %12 {offsets = [0, 0], sizes = [56, 32], strides = [1, 1]} : vector<56x35xf32> to vector<56x32xf32>
    %14 = vector.extract_strided_slice %12 {offsets = [0, 32], sizes = [56, 3], strides = [1, 1]} : vector<56x35xf32> to vector<56x3xf32>
    %15 = arith.mulf %14, %14 : vector<56x3xf32>
    %cst_6 = arith.constant dense<0.000000e+00> : vector<56xf32>
    %16 = vector.multi_reduction <add>, %15, %cst_6 [1] : vector<56x3xf32> to vector<56xf32>
    %17 = vector.shape_cast %16 : vector<56xf32> to vector<56x1xf32>
    %cst_7 = arith.constant 9.99999993E-9 : f32
    %18 = vector.broadcast %cst_7 : f32 to vector<56x1xf32>
    %19 = arith.addf %17, %18 : vector<56x1xf32>
    %20 = math.sqrt %19 : vector<56x1xf32>
    %cst_8 = arith.constant 1.000000e+00 : f32
    %21 = vector.broadcast %cst_8 : f32 to vector<56x1xf32>
    %22 = arith.addf %20, %21 : vector<56x1xf32>
    %23 = tpu.reciprocal %22 : vector<56x1xf32> -> vector<56x1xf32>
    %24 = vector.broadcast %23 : vector<56x1xf32> to vector<56x3xf32>
    %25 = arith.mulf %14, %24 : vector<56x3xf32>
    %c0_9 = arith.constant 0 : index
    %c0_10 = arith.constant 0 : index
    %26 = vector.load %arg5[%c0_9, %c0_10] : memref<1x32xf32, #tpu.memory_space<vmem>>, vector<1x32xf32>
    %27 = vector.broadcast %17 : vector<56x1xf32> to vector<56x32xf32>
    %28 = vector.broadcast %26 : vector<1x32xf32> to vector<56x32xf32>
    %29 = arith.mulf %27, %28 : vector<56x32xf32>
    %30 = arith.addf %13, %29 : vector<56x32xf32>
    %c0_11 = arith.constant 0 : index
    %c0_12 = arith.constant 0 : index
    %31 = vector.load %arg6[%c0_11, %c0_12] : memref<1x32xf32, #tpu.memory_space<vmem>>, vector<1x32xf32>
    %32 = vector.broadcast %31 : vector<1x32xf32> to vector<56x32xf32>
    %33 = arith.addf %30, %32 : vector<56x32xf32>
    %34 = arith.negf %33 : vector<56x32xf32>
    %35 = math.exp %34 : vector<56x32xf32>
    %cst_13 = arith.constant 1.000000e+00 : f32
    %36 = vector.broadcast %cst_13 : f32 to vector<56x32xf32>
    %37 = arith.addf %36, %35 : vector<56x32xf32>
    %38 = arith.divf %36, %37 : vector<56x32xf32>
    %39 = arith.mulf %33, %38 : vector<56x32xf32>
    %c0_14 = arith.constant 0 : index
    %c0_15 = arith.constant 0 : index
    %40 = vector.load %arg7[%c0_14, %c0_15] : memref<32x32xf32, #tpu.memory_space<vmem>>, vector<32x32xf32>
    %cst_16 = arith.constant dense<0.000000e+00> : vector<56x32xf32>
    %41 = tpu.matmul %39, %40, %cst_16 {dimension_numbers = #tpu.dot_dimension_numbers<[1], [0], [0], [1], [0, 0, 1, 1], [], []>} : vector<56x32xf32>, vector<32x32xf32>, vector<56x32xf32> -> vector<56x32xf32>
    %c0_17 = arith.constant 0 : index
    %c0_18 = arith.constant 0 : index
    %42 = vector.load %arg8[%c0_17, %c0_18] : memref<1x32xf32, #tpu.memory_space<vmem>>, vector<1x32xf32>
    %43 = vector.broadcast %42 : vector<1x32xf32> to vector<56x32xf32>
    %44 = arith.addf %41, %43 : vector<56x32xf32>
    %45 = arith.negf %44 : vector<56x32xf32>
    %46 = math.exp %45 : vector<56x32xf32>
    %cst_19 = arith.constant 1.000000e+00 : f32
    %47 = vector.broadcast %cst_19 : f32 to vector<56x32xf32>
    %48 = arith.addf %47, %46 : vector<56x32xf32>
    %49 = arith.divf %47, %48 : vector<56x32xf32>
    %50 = arith.mulf %44, %49 : vector<56x32xf32>
    %c0_20 = arith.constant 0 : index
    %c0_21 = arith.constant 0 : index
    %51 = vector.load %arg9[%c0_20, %c0_21] : memref<32x32xf32, #tpu.memory_space<vmem>>, vector<32x32xf32>
    %cst_22 = arith.constant dense<0.000000e+00> : vector<56x32xf32>
    %52 = tpu.matmul %50, %51, %cst_22 {dimension_numbers = #tpu.dot_dimension_numbers<[1], [0], [0], [1], [0, 0, 1, 1], [], []>} : vector<56x32xf32>, vector<32x32xf32>, vector<56x32xf32> -> vector<56x32xf32>
    %c0_23 = arith.constant 0 : index
    %c0_24 = arith.constant 0 : index
    %53 = vector.load %arg10[%c0_23, %c0_24] : memref<1x32xf32, #tpu.memory_space<vmem>>, vector<1x32xf32>
    %54 = vector.broadcast %53 : vector<1x32xf32> to vector<56x32xf32>
    %55 = arith.addf %52, %54 : vector<56x32xf32>
    %56 = arith.negf %55 : vector<56x32xf32>
    %57 = math.exp %56 : vector<56x32xf32>
    %cst_25 = arith.constant 1.000000e+00 : f32
    %58 = vector.broadcast %cst_25 : f32 to vector<56x32xf32>
    %59 = arith.addf %58, %57 : vector<56x32xf32>
    %60 = arith.divf %58, %59 : vector<56x32xf32>
    %61 = arith.mulf %55, %60 : vector<56x32xf32>
    %c0_26 = arith.constant 0 : index
    %c0_27 = arith.constant 0 : index
    %62 = vector.load %arg11[%c0_26, %c0_27] : memref<32x1xf32, #tpu.memory_space<vmem>>, vector<32x1xf32>
    %cst_28 = arith.constant dense<0.000000e+00> : vector<56x1xf32>
    %63 = tpu.matmul %61, %62, %cst_28 {dimension_numbers = #tpu.dot_dimension_numbers<[1], [0], [0], [1], [0, 0, 1, 1], [], []>} : vector<56x32xf32>, vector<32x1xf32>, vector<56x1xf32> -> vector<56x1xf32>
    %64 = vector.broadcast %63 : vector<56x1xf32> to vector<56x3xf32>
    %65 = arith.mulf %25, %64 : vector<56x3xf32>
    %66 = tpu.concatenate %50, %65 in 1 : vector<56x32xf32>, vector<56x3xf32> -> vector<56x35xf32>
    %c0_29 = arith.constant 0 : index
    %c0_30 = arith.constant 0 : index
    %67 = vector.load %arg3[%c0_29, %c0_30] : memref<1x56xi32, #tpu.memory_space<vmem>>, vector<1x56xi32>
    %68 = tpu.iota {dimensions = array<i32: 0>} : vector<8x56xi32>
    %69 = vector.broadcast %67 : vector<1x56xi32> to vector<8x56xi32>
    %70 = arith.cmpi eq, %68, %69 : vector<8x56xi32>
    %cst_31 = arith.constant 1.000000e+00 : f32
    %cst_32 = arith.constant 0.000000e+00 : f32
    %71 = vector.broadcast %cst_31 : f32 to vector<8x56xf32>
    %72 = vector.broadcast %cst_32 : f32 to vector<8x56xf32>
    %73 = arith.select %70, %71, %72 : vector<8x56xi1>, vector<8x56xf32>
    %cst_33 = arith.constant dense<0.000000e+00> : vector<8x35xf32>
    %74 = tpu.matmul %73, %66, %cst_33 {dimension_numbers = #tpu.dot_dimension_numbers<[1], [0], [0], [1], [0, 0, 1, 1], [], []>} : vector<8x56xf32>, vector<56x35xf32>, vector<8x35xf32> -> vector<8x35xf32>
    %c0_i32 = arith.constant 0 : i32
    %75 = arith.cmpi eq, %arg1, %c0_i32 : i32
    %76 = arith.extui %75 : i1 to i32
    %c0_i32_34 = arith.constant 0 : i32
    %77 = arith.cmpi ne, %76, %c0_i32_34 : i32
    scf.if %77 {
      %cst_41 = arith.constant 0.000000e+00 : f32
      %82 = vector.broadcast %cst_41 : f32 to vector<1x8x35xf32>
      %c0_42 = arith.constant 0 : index
      %c0_43 = arith.constant 0 : index
      %c0_44 = arith.constant 0 : index
      %83 = vector.load %arg12[%c0_42, %c0_43, %c0_44] : memref<1x8x35xf32, #tpu.memory_space<vmem>>, vector<1x8x35xf32>
      tpu.vector_store %arg12[%c0_42, %c0_43, %c0_44], %82 {strides = array<i32>} : memref<1x8x35xf32, #tpu.memory_space<vmem>>, vector<1x8x35xf32>,
    } else {
    }
    %c0_35 = arith.constant 0 : index
    %c0_36 = arith.constant 0 : index
    %c0_37 = arith.constant 0 : index
    %78 = vector.load %arg12[%c0_35, %c0_36, %c0_37] : memref<1x8x35xf32, #tpu.memory_space<vmem>>, vector<1x8x35xf32>
    %79 = vector.shape_cast %74 : vector<8x35xf32> to vector<1x8x35xf32>
    %80 = arith.addf %78, %79 : vector<1x8x35xf32>
    %c0_38 = arith.constant 0 : index
    %c0_39 = arith.constant 0 : index
    %c0_40 = arith.constant 0 : index
    %81 = vector.load %arg12[%c0_38, %c0_39, %c0_40] : memref<1x8x35xf32, #tpu.memory_space<vmem>>, vector<1x8x35xf32>
    tpu.vector_store %arg12[%c0_38, %c0_39, %c0_40], %80 {strides = array<i32>} : memref<1x8x35xf32, #tpu.memory_space<vmem>>, vector<1x8x35xf32>,
    return
  }
  func.func @transform_0(%arg0: i32, %arg1: i32) -> (i32, i32) {
    %c1_i32 = arith.constant 1 : i32
    %0 = arith.muli %arg0, %c1_i32 : i32
    %1 = arith.addi %0, %arg1 : i32
    %c0_i32 = arith.constant 0 : i32
    %c0_i32_0 = arith.constant 0 : i32
    return %1, %c0_i32 : i32, i32
  }
  func.func @transform_1(%arg0: i32, %arg1: i32) -> (i32, i32) {
    %c1_i32 = arith.constant 1 : i32
    %0 = arith.muli %arg0, %c1_i32 : i32
    %1 = arith.addi %0, %arg1 : i32
    %c0_i32 = arith.constant 0 : i32
    %c0_i32_0 = arith.constant 0 : i32
    return %c0_i32, %1 : i32, i32
  }
  func.func @transform_2(%arg0: i32, %arg1: i32) -> (i32, i32) {
    %c0_i32 = arith.constant 0 : i32
    %c0_i32_0 = arith.constant 0 : i32
    %c0_i32_1 = arith.constant 0 : i32
    return %c0_i32, %c0_i32_0 : i32, i32
  }
  func.func @transform_3(%arg0: i32, %arg1: i32) -> (i32, i32) {
    %c0_i32 = arith.constant 0 : i32
    %c0_i32_0 = arith.constant 0 : i32
    %c0_i32_1 = arith.constant 0 : i32
    return %c0_i32, %c0_i32_0 : i32, i32
  }
  func.func @transform_4(%arg0: i32, %arg1: i32) -> (i32, i32) {
    %c0_i32 = arith.constant 0 : i32
    %c0_i32_0 = arith.constant 0 : i32
    %c0_i32_1 = arith.constant 0 : i32
    return %c0_i32, %c0_i32_0 : i32, i32
  }
  func.func @transform_5(%arg0: i32, %arg1: i32) -> (i32, i32) {
    %c0_i32 = arith.constant 0 : i32
    %c0_i32_0 = arith.constant 0 : i32
    %c0_i32_1 = arith.constant 0 : i32
    return %c0_i32, %c0_i32_0 : i32, i32
  }
  func.func @transform_6(%arg0: i32, %arg1: i32) -> (i32, i32) {
    %c0_i32 = arith.constant 0 : i32
    %c0_i32_0 = arith.constant 0 : i32
    %c0_i32_1 = arith.constant 0 : i32
    return %c0_i32, %c0_i32_0 : i32, i32
  }
  func.func @transform_7(%arg0: i32, %arg1: i32) -> (i32, i32) {
    %c0_i32 = arith.constant 0 : i32
    %c0_i32_0 = arith.constant 0 : i32
    %c0_i32_1 = arith.constant 0 : i32
    return %c0_i32, %c0_i32_0 : i32, i32
  }
  func.func @transform_8(%arg0: i32, %arg1: i32) -> (i32, i32) {
    %c0_i32 = arith.constant 0 : i32
    %c0_i32_0 = arith.constant 0 : i32
    %c0_i32_1 = arith.constant 0 : i32
    return %c0_i32, %c0_i32_0 : i32, i32
  }
  func.func @transform_9(%arg0: i32, %arg1: i32) -> (i32, i32) {
    %c0_i32 = arith.constant 0 : i32
    %c0_i32_0 = arith.constant 0 : i32
    %c0_i32_1 = arith.constant 0 : i32
    return %c0_i32, %c0_i32_0 : i32, i32
  }
  func.func @transform_10(%arg0: i32, %arg1: i32) -> (i32, i32, i32) {
    %c0_i32 = arith.constant 0 : i32
    %c0_i32_0 = arith.constant 0 : i32
    %c0_i32_1 = arith.constant 0 : i32
    return %arg0, %c0_i32, %c0_i32_0 : i32, i32, i32
  }
}

</mosaic_0001>

<llo_original>
// kernel: tpu_custom_call.1
$region0: #{tpu_custom_call.1}
  #allocation0 [shape = 'u32[]', space=smem, size = 0x4, offset = 0x4, fixed_abs, tag = 'smem constant byte address 0x4 - core index']
  #allocation1 [shape = 'u32[144,128]{1,0:T(1,128)}', space=vmem, size = 0x12000, scoped, tag = 'internal scratch']
  %s0 = inlined_call_operand.vmem [shape: s32[56,2], index: 0, kind: input, shape index: {}]
  %s1 = inlined_call_operand.vmem [shape: s32[1,56], index: 1, kind: input, shape index: {}]
  %s2 = inlined_call_operand.vmem [shape: f32[16,35], index: 2, kind: input, shape index: {}]
  %s3 = inlined_call_operand.vmem [shape: f32[1,32], index: 3, kind: input, shape index: {}]
  %s4 = inlined_call_operand.vmem [shape: f32[1,32], index: 4, kind: input, shape index: {}]
  %s5 = inlined_call_operand.vmem [shape: f32[32,32], index: 5, kind: input, shape index: {}]
  %s6 = inlined_call_operand.vmem [shape: f32[1,32], index: 6, kind: input, shape index: {}]
  %s7 = inlined_call_operand.vmem [shape: f32[32,32], index: 7, kind: input, shape index: {}]
  %s8 = inlined_call_operand.vmem [shape: f32[1,32], index: 8, kind: input, shape index: {}]
  %s9 = inlined_call_operand.vmem [shape: f32[32,1], index: 9, kind: input, shape index: {}]
  %s10 = inlined_call_operand.hbm [shape: f32[1,8,35], index: 10, kind: output, shape index: {}]
  %s11 = sld [smem:[#allocation0]]
  $region54: #{tpu_custom_call.1} parent=0
    _
  %s13 = ssub.s32 1, %s11
  %s14 = scalar_select 0, %s13, %s11
  $region1: #{tpu_custom_call.1} parent=0
    #allocation2 [shape = 'u8[4096]{0}', space=vmem, size = 0x1000, scoped, tag = 'output window, operand 0, single buffered']
    #allocation3 [shape = 's32[1]{0}', space=sflag, size = 0x4, scoped, tag = 'scoped memory for tpu_custom_call.1']
    %15 = vsyncpa [#allocation3], 0
    // Predicated region
    $region2: #{tpu_custom_call.1} parent=1 // pred_check
      _
    $region3: #{tpu_custom_call.1} parent=1 // pred_check_branch
      %17 = sbr.rel (0) target = $region5
    $region4: #{tpu_custom_call.1} parent=1 // pred_region
      %s18 = sadd.s32 0, 0
      %s19 = smul.u32 7, %s18
      %p20 = scmp.lt.s32.totalorder %s19, 6
      %s21 = scalar_select %p20, %s19, 6
      %s22 = smul.addr %s21, 8
      %s23 = scalar_lea.vmem %s0, %s22
      %s24 = sadd.s32 0, 0
      %s25 = smul.u32 7, %s24
    $region5: #{tpu_custom_call.1} parent=1 // pred_fallthru
      _
    // Predicated region
    $region6: #{tpu_custom_call.1} parent=1 // pred_check
      _
    $region7: #{tpu_custom_call.1} parent=1 // pred_check_branch
      %27 = sbr.rel (0) target = $region9
    $region8: #{tpu_custom_call.1} parent=1 // pred_region
      %s28 = sadd.s32 0, 0
      %p29 = scmp.lt.s32.totalorder %s28, 0
      %s30 = scalar_select %p29, %s28, 0
      %s31 = scalar_lea.vmem %s1, %s30
      %s32 = sadd.s32 0, 0
    $region9: #{tpu_custom_call.1} parent=1 // pred_fallthru
      _
    // Predicated region
    $region10: #{tpu_custom_call.1} parent=1 // pred_check
      _
    $region11: #{tpu_custom_call.1} parent=1 // pred_check_branch
      %34 = sbr.rel (0) target = $region13
    $region12: #{tpu_custom_call.1} parent=1 // pred_region
      _
    $region13: #{tpu_custom_call.1} parent=1 // pred_fallthru
      _
    // Predicated region
    $region14: #{tpu_custom_call.1} parent=1 // pred_check
      _
    $region15: #{tpu_custom_call.1} parent=1 // pred_check_branch
      %36 = sbr.rel (0) target = $region17
    $region16: #{tpu_custom_call.1} parent=1 // pred_region
      _
    $region17: #{tpu_custom_call.1} parent=1 // pred_fallthru
      _
    // Predicated region
    $region18: #{tpu_custom_call.1} parent=1 // pred_check
      _
    $region19: #{tpu_custom_call.1} parent=1 // pred_check_branch
      %38 = sbr.rel (0) target = $region21
    $region20: #{tpu_custom_call.1} parent=1 // pred_region
      _
    $region21: #{tpu_custom_call.1} parent=1 // pred_fallthru
      _
    // Predicated region
    $region22: #{tpu_custom_call.1} parent=1 // pred_check
      _
    $region23: #{tpu_custom_call.1} parent=1 // pred_check_branch
      %40 = sbr.rel (0) target = $region25
    $region24: #{tpu_custom_call.1} parent=1 // pred_region
      _
    $region25: #{tpu_custom_call.1} parent=1 // pred_fallthru
      _
    // Predicated region
    $region26: #{tpu_custom_call.1} parent=1 // pred_check
      _
    $region27: #{tpu_custom_call.1} parent=1 // pred_check_branch
      %42 = sbr.rel (0) target = $region29
    $region28: #{tpu_custom_call.1} parent=1 // pred_region
      _
    $region29: #{tpu_custom_call.1} parent=1 // pred_fallthru
      _
    // Predicated region
    $region30: #{tpu_custom_call.1} parent=1 // pred_check
      _
    $region31: #{tpu_custom_call.1} parent=1 // pred_check_branch
      %44 = sbr.rel (0) target = $region33
    $region32: #{tpu_custom_call.1} parent=1 // pred_region
      _
    $region33: #{tpu_custom_call.1} parent=1 // pred_fallthru
      _
    // Predicated region
    $region34: #{tpu_custom_call.1} parent=1 // pred_check
      _
    $region35: #{tpu_custom_call.1} parent=1 // pred_check_branch
      %46 = sbr.rel (0) target = $region37
    $region36: #{tpu_custom_call.1} parent=1 // pred_region
      _
    $region37: #{tpu_custom_call.1} parent=1 // pred_fallthru
      _
    // Predicated region
    $region38: #{tpu_custom_call.1} parent=1 // pred_check
      _
    $region39: #{tpu_custom_call.1} parent=1 // pred_check_branch
      %48 = sbr.rel (0) target = $region41
    $region40: #{tpu_custom_call.1} parent=1 // pred_region
      _
    $region41: #{tpu_custom_call.1} parent=1 // pred_fallthru
      _
    %s49 = sadd.s32 0, 0
    %s50 = smul.u32 7, %s49
    %p51 = scmp.lt.s32.totalorder %s50, 6
    %s52 = scalar_select %p51, %s50, 6
    %s53 = smul.addr %s52, 8
    %s54 = scalar_lea.vmem %s0, %s53
    %s55 = sadd.s32 0, 0
    %p56 = scmp.lt.s32.totalorder %s55, 0
    %s57 = scalar_select %p56, %s55, 0
    %s58 = scalar_lea.vmem %s1, %s57
    %s59 = sadd.s32 0, 0
    %s60 = smul.u32 7, %s59
    %p61 = scmp.lt.s32.totalorder %s60, 6
    %s62 = scalar_select %p61, %s60, 6
    %s63 = smul.addr %s62, 8
    %s64 = scalar_lea.vmem %s0, %s63
    %s65 = sadd.s32 0, 0
    %s66 = smul.u32 7, %s65
    %s67 = sadd.s32 0, 0
    %p68 = scmp.lt.s32.totalorder %s67, 0
    %s69 = scalar_select %p68, %s67, 0
    %s70 = scalar_lea.vmem %s1, %s69
    %s71 = sadd.s32 0, 0
    %v72 = vld [vmem:[%s64] sm:$0xff]
    %v73 = vld [vmem:[%s64 + $0x8] sm:$0xff]
    %v74 = vld [vmem:[%s64 + $0x10] sm:$0xff]
    %v75 = vld [vmem:[%s64 + $0x18] sm:$0xff]
    %v76 = vld [vmem:[%s64 + $0x20] sm:$0xff]
    %v77 = vld [vmem:[%s64 + $0x28] sm:$0xff]
    %v78 = vld [vmem:[%s64 + $0x30] sm:$0xff]
    %v79 = vlaneseq
    %v80 = vand.u32 %v79, 127
    %81 = vset.pattern.permute.xlu0 0
    %82 = vperm.xlu0 %81, %v72
    %v83 = vpop.permute.xlu0 %82
    %84 = vset.pattern.permute.xlu0 0
    %85 = vperm.xlu0 %84, %v73
    %v86 = vpop.permute.xlu0 %85
    %87 = vset.pattern.permute.xlu0 0
    %88 = vperm.xlu0 %87, %v74
    %v89 = vpop.permute.xlu0 %88
    %90 = vset.pattern.permute.xlu0 0
    %91 = vperm.xlu0 %90, %v75
    %v92 = vpop.permute.xlu0 %91
    %93 = vset.pattern.permute.xlu0 0
    %94 = vperm.xlu0 %93, %v76
    %v95 = vpop.permute.xlu0 %94
    %96 = vset.pattern.permute.xlu0 0
    %97 = vperm.xlu0 %96, %v77
    %v98 = vpop.permute.xlu0 %97
    %99 = vset.pattern.permute.xlu0 0
    %100 = vperm.xlu0 %99, %v78
    %v101 = vpop.permute.xlu0 %100
    %vm102 = vcmp.eq.s32.totalorder %v80, %v83
    %vm103 = vcmp.eq.s32.totalorder %v80, %v86
    %vm104 = vcmp.eq.s32.totalorder %v80, %v89
    %vm105 = vcmp.eq.s32.totalorder %v80, %v92
    %vm106 = vcmp.eq.s32.totalorder %v80, %v95
    %vm107 = vcmp.eq.s32.totalorder %v80, %v98
    %vm108 = vcmp.eq.s32.totalorder %v80, %v101
    %109 = vset.pattern.permute.xlu0 1
    %110 = vperm.xlu0 %109, %v72
    %v111 = vpop.permute.xlu0 %110
    %112 = vset.pattern.permute.xlu0 1
    %113 = vperm.xlu0 %112, %v73
    %v114 = vpop.permute.xlu0 %113
    %115 = vset.pattern.permute.xlu0 1
    %116 = vperm.xlu0 %115, %v74
    %v117 = vpop.permute.xlu0 %116
    %118 = vset.pattern.permute.xlu0 1
    %119 = vperm.xlu0 %118, %v75
    %v120 = vpop.permute.xlu0 %119
    %121 = vset.pattern.permute.xlu0 1
    %122 = vperm.xlu0 %121, %v76
    %v123 = vpop.permute.xlu0 %122
    %124 = vset.pattern.permute.xlu0 1
    %125 = vperm.xlu0 %124, %v77
    %v126 = vpop.permute.xlu0 %125
    %127 = vset.pattern.permute.xlu0 1
    %128 = vperm.xlu0 %127, %v78
    %v129 = vpop.permute.xlu0 %128
    %vm130 = vcmp.eq.s32.totalorder %v80, %v111
    %vm131 = vcmp.eq.s32.totalorder %v80, %v114
    %vm132 = vcmp.eq.s32.totalorder %v80, %v117
    %vm133 = vcmp.eq.s32.totalorder %v80, %v120
    %vm134 = vcmp.eq.s32.totalorder %v80, %v123
    %vm135 = vcmp.eq.s32.totalorder %v80, %v126
    %vm136 = vcmp.eq.s32.totalorder %v80, %v129
    %vm137 = vmor %vm102, %vm130
    %vm138 = vmor %vm103, %vm131
    %vm139 = vmor %vm104, %vm132
    %vm140 = vmor %vm105, %vm133
    %vm141 = vmor %vm106, %vm134
    %vm142 = vmor %vm107, %vm135
    %vm143 = vmor %vm108, %vm136
    %v144 = vsel %vm137, 1.0, 0.0
    %v145 = vsel %vm138, 1.0, 0.0
    %v146 = vsel %vm139, 1.0, 0.0
    %v147 = vsel %vm140, 1.0, 0.0
    %v148 = vsel %vm141, 1.0, 0.0
    %v149 = vsel %vm142, 1.0, 0.0
    %v150 = vsel %vm143, 1.0, 0.0
    %v151 = vld [vmem:[%s2] sm:$0xff]
    %v152 = vld [vmem:[%s2 + $0x8] sm:$0xff]
    %vm153 = vcmask 130048
    %v155 = vsel %vm153, %v144, 0
    %v158 = vsel %vm153, %v145, 0
    %v161 = vsel %vm153, %v146, 0
    %v164 = vsel %vm153, %v147, 0
    %v167 = vsel %vm153, %v148, 0
    %v170 = vsel %vm153, %v149, 0
    %v173 = vsel %vm153, %v150, 0
    %175 = vmatprep.subr.mxu0 0.0
    %176 = vmatpush1.msra.mxu0 0.0
    %177 = vmatprep.subr.mxu0 0.0
    %178 = vmatpush1.msra.mxu0 0.0
    %179 = vmatprep.subr.mxu0 0.0
    %180 = vmatpush1.msra.mxu0 0.0
    %181 = vmatprep.subr.mxu0 0.0
    %182 = vmatpush1.msra.mxu0 0.0
    %183 = vmatprep.subr.mxu0 0.0
    %184 = vmatpush1.msra.mxu0 0.0
    %185 = vmatprep.subr.mxu0 0.0
    %186 = vmatpush1.msra.mxu0 0.0
    %187 = vmatprep.subr.mxu0 0.0
    %188 = vmatpush1.msra.mxu0 0.0
    %189 = vmatprep.subr.mxu0 0.0
    %190 = vmatpush1.msra.mxu0 0.0
    %191 = vmatprep.subr.mxu0 0.0
    %192 = vmatpush1.msra.mxu0 0.0
    %193 = vmatprep.subr.mxu0 0.0
    %194 = vmatpush1.msra.mxu0 0.0
    %195 = vmatprep.subr.mxu0 0.0
    %196 = vmatpush1.msra.mxu0 0.0
    %197 = vmatprep.subr.mxu0 0.0
    %198 = vmatpush1.msra.mxu0 0.0
    %199 = vmatprep.subr.mxu0 0.0
    %200 = vmatpush1.msra.mxu0 0.0
    %201 = vmatprep.subr.mxu0 0.0
    %202 = vmatpush1.msra.mxu0 0.0
    %203 = vmatprep.subr.mxu0 0.0
    %204 = vmatpush1.msra.mxu0 %v152
    %205 = vmatprep.subr.mxu0 0.0
    %206 = vmatpush1.msra.mxu0 %v151
    %207 = vmatprep.subr.mxu0 0.0
    %208 = vmatpush2.msra.mxu0 0.0
    %209 = vmatprep.subr.mxu0 0.0
    %210 = vmatpush2.msra.mxu0 0.0
    %211 = vmatprep.subr.mxu0 0.0
    %212 = vmatpush2.msra.mxu0 0.0
    %213 = vmatprep.subr.mxu0 0.0
    %214 = vmatpush2.msra.mxu0 0.0
    %215 = vmatprep.subr.mxu0 0.0
    %216 = vmatpush2.msra.mxu0 0.0
    %217 = vmatprep.subr.mxu0 0.0
    %218 = vmatpush2.msra.mxu0 0.0
    %219 = vmatprep.subr.mxu0 0.0
    %220 = vmatpush2.msra.mxu0 0.0
    %221 = vmatprep.subr.mxu0 0.0
    %222 = vmatpush2.msra.mxu0 0.0
    %223 = vmatprep.subr.mxu0 0.0
    %224 = vmatpush2.msra.mxu0 0.0
    %225 = vmatprep.subr.mxu0 0.0
    %226 = vmatpush2.msra.mxu0 0.0
    %227 = vmatprep.subr.mxu0 0.0
    %228 = vmatpush2.msra.mxu0 0.0
    %229 = vmatprep.subr.mxu0 0.0
    %230 = vmatpush2.msra.mxu0 0.0
    %231 = vmatprep.subr.mxu0 0.0
    %232 = vmatpush2.msra.mxu0 0.0
    %233 = vmatprep.subr.mxu0 0.0
    %234 = vmatpush2.msra.mxu0 0.0
    %235 = vmatprep.subr.mxu0 0.0
    %236 = vmatpush2.msra.mxu0 0.0
    %237 = vmatprep.subr.mxu0 0.0
    %238 = vmatpush2.msra.mxu0 0.0
    %239 = vmatprep.mubr.f32.mxu0 0.0
    %240 = vmatmul.mubr.f32.gmra.mxu0 %v155
    %v241 = vpop.f32.mrf.mxu0
    %v242 = vadd.f32 0.0, %v241
    %v243 = vpop.f32.mrf.mxu0
    %244 = vmatprep.mubr.f32.mxu0 0.0
    %245 = vmatmul.mubr.f32.gmra.mxu0 %v158
    %v246 = vpop.f32.mrf.mxu0
    %v247 = vadd.f32 0.0, %v246
    %v248 = vpop.f32.mrf.mxu0
    %249 = vmatprep.mubr.f32.mxu0 0.0
    %250 = vmatmul.mubr.f32.gmra.mxu0 %v161
    %v251 = vpop.f32.mrf.mxu0
    %v252 = vadd.f32 0.0, %v251
    %v253 = vpop.f32.mrf.mxu0
    %254 = vmatprep.mubr.f32.mxu0 0.0
    %255 = vmatmul.mubr.f32.gmra.mxu0 %v164
    %v256 = vpop.f32.mrf.mxu0
    %v257 = vadd.f32 0.0, %v256
    %v258 = vpop.f32.mrf.mxu0
    %259 = vmatprep.mubr.f32.mxu0 0.0
    %260 = vmatmul.mubr.f32.gmra.mxu0 %v167
    %v261 = vpop.f32.mrf.mxu0
    %v262 = vadd.f32 0.0, %v261
    %v263 = vpop.f32.mrf.mxu0
    %264 = vmatprep.mubr.f32.mxu0 0.0
    %265 = vmatmul.mubr.f32.gmra.mxu0 %v170
    %v266 = vpop.f32.mrf.mxu0
    %v267 = vadd.f32 0.0, %v266
    %v268 = vpop.f32.mrf.mxu0
    %269 = vmatprep.mubr.f32.mxu0 0.0
    %270 = vmatmul.mubr.f32.gmra.mxu0 %v173
    %v271 = vpop.f32.mrf.mxu0
    %v272 = vadd.f32 0.0, %v271
    %v273 = vpop.f32.mrf.mxu0
    %274 = vdwg.mxu0
    %v275 = vmul.f32 %v242, %v242
    %v276 = vmul.f32 %v247, %v247
    %v277 = vmul.f32 %v252, %v252
    %v278 = vmul.f32 %v257, %v257
    %v279 = vmul.f32 %v262, %v262
    %v280 = vmul.f32 %v267, %v267
    %v281 = vmul.f32 %v272, %v272
    %289 = vrot.lane.b32.xlu0 %v275, 96
    %v290 = vpop.permute.xlu0 %289
    %291 = vrot.lane.b32.xlu0 %v276, 96
    %v292 = vpop.permute.xlu0 %291
    %293 = vrot.lane.b32.xlu0 %v277, 96
    %v294 = vpop.permute.xlu0 %293
    %295 = vrot.lane.b32.xlu0 %v278, 96
    %v296 = vpop.permute.xlu0 %295
    %297 = vrot.lane.b32.xlu0 %v279, 96
    %v298 = vpop.permute.xlu0 %297
    %299 = vrot.lane.b32.xlu0 %v280, 96
    %v300 = vpop.permute.xlu0 %299
    %301 = vrot.lane.b32.xlu0 %v281, 96
    %v302 = vpop.permute.xlu0 %301
    %vm310 = vcmask 23552
    %v311 = vsel %vm310, %v290, 0.0
    %312 = vadd.xlane.f32.xlu0 %v311
    %v313 = vpop.xlane.xlu0 %312
    %v314 = vsel %vm310, %v292, 0.0
    %315 = vadd.xlane.f32.xlu0 %v314
    %v316 = vpop.xlane.xlu0 %315
    %v317 = vsel %vm310, %v294, 0.0
    %318 = vadd.xlane.f32.xlu0 %v317
    %v319 = vpop.xlane.xlu0 %318
    %v320 = vsel %vm310, %v296, 0.0
    %321 = vadd.xlane.f32.xlu0 %v320
    %v322 = vpop.xlane.xlu0 %321
    %v323 = vsel %vm310, %v298, 0.0
    %324 = vadd.xlane.f32.xlu0 %v323
    %v325 = vpop.xlane.xlu0 %324
    %v326 = vsel %vm310, %v300, 0.0
    %327 = vadd.xlane.f32.xlu0 %v326
    %v328 = vpop.xlane.xlu0 %327
    %v329 = vsel %vm310, %v302, 0.0
    %330 = vadd.xlane.f32.xlu0 %v329
    %v331 = vpop.xlane.xlu0 %330
    %v332 = vadd.f32 %v313, 1e-08
    %v333 = vadd.f32 %v316, 1e-08
    %v334 = vadd.f32 %v319, 1e-08
    %v335 = vadd.f32 %v322, 1e-08
    %v336 = vadd.f32 %v325, 1e-08
    %v337 = vadd.f32 %v328, 1e-08
    %v338 = vadd.f32 %v331, 1e-08
    %v339 = vrsqrt.pop %v332
    %v340 = vmul.f32 %v332, %v339
    %vm341 = vcmp.eq.f32.partialorder %v332, inf
    %v342 = vsel %vm341, %v332, %v340
    %vm343 = vcmp.eq.f32.partialorder %v332, 0.0
    %v344 = vand.u32 %v332, 2147483648
    %v345 = vsel %vm343, %v344, %v342
    %v346 = vrsqrt.pop %v333
    %v347 = vmul.f32 %v333, %v346
    %vm348 = vcmp.eq.f32.partialorder %v333, inf
    %v349 = vsel %vm348, %v333, %v347
    %vm350 = vcmp.eq.f32.partialorder %v333, 0.0
    %v351 = vand.u32 %v333, 2147483648
    %v352 = vsel %vm350, %v351, %v349
    %v353 = vrsqrt.pop %v334
    %v354 = vmul.f32 %v334, %v353
    %vm355 = vcmp.eq.f32.partialorder %v334, inf
    %v356 = vsel %vm355, %v334, %v354
    %vm357 = vcmp.eq.f32.partialorder %v334, 0.0
    %v358 = vand.u32 %v334, 2147483648
    %v359 = vsel %vm357, %v358, %v356
    %v360 = vrsqrt.pop %v335
    %v361 = vmul.f32 %v335, %v360
    %vm362 = vcmp.eq.f32.partialorder %v335, inf
    %v363 = vsel %vm362, %v335, %v361
    %vm364 = vcmp.eq.f32.partialorder %v335, 0.0
    %v365 = vand.u32 %v335, 2147483648
    %v366 = vsel %vm364, %v365, %v363
    %v367 = vrsqrt.pop %v336
    %v368 = vmul.f32 %v336, %v367
    %vm369 = vcmp.eq.f32.partialorder %v336, inf
    %v370 = vsel %vm369, %v336, %v368
    %vm371 = vcmp.eq.f32.partialorder %v336, 0.0
    %v372 = vand.u32 %v336, 2147483648
    %v373 = vsel %vm371, %v372, %v370
    %v374 = vrsqrt.pop %v337
    %v375 = vmul.f32 %v337, %v374
    %vm376 = vcmp.eq.f32.partialorder %v337, inf
    %v377 = vsel %vm376, %v337, %v375
    %vm378 = vcmp.eq.f32.partialorder %v337, 0.0
    %v379 = vand.u32 %v337, 2147483648
    %v380 = vsel %vm378, %v379, %v377
    %v381 = vrsqrt.pop %v338
    %v382 = vmul.f32 %v338, %v381
    %vm383 = vcmp.eq.f32.partialorder %v338, inf
    %v384 = vsel %vm383, %v338, %v382
    %vm385 = vcmp.eq.f32.partialorder %v338, 0.0
    %v386 = vand.u32 %v338, 2147483648
    %v387 = vsel %vm385, %v386, %v384
    %v388 = vadd.f32 %v345, 1.0
    %v389 = vadd.f32 %v352, 1.0
    %v390 = vadd.f32 %v359, 1.0
    %v391 = vadd.f32 %v366, 1.0
    %v392 = vadd.f32 %v373, 1.0
    %v393 = vadd.f32 %v380, 1.0
    %v394 = vadd.f32 %v387, 1.0
    %v395 = vrcp.pop %v388
    %v396 = vrcp.pop %v389
    %v397 = vrcp.pop %v390
    %v398 = vrcp.pop %v391
    %v399 = vrcp.pop %v392
    %v400 = vrcp.pop %v393
    %v401 = vrcp.pop %v394
    %v402 = vmul.f32 %v242, %v395
    %v403 = vmul.f32 %v247, %v396
    %v404 = vmul.f32 %v252, %v397
    %v405 = vmul.f32 %v257, %v398
    %v406 = vmul.f32 %v262, %v399
    %v407 = vmul.f32 %v267, %v400
    %v408 = vmul.f32 %v272, %v401
    %v409 = vld [vmem:[%s3] sm:$0x1]
    %v411 = vlaneseq
    %v412 = vshrl.u32 %v411, 7
    %v413 = vsub.s32 0, %v412
    %v414 = vrot.slane %v409, %v413
    %v416 = vmul.f32 %v313, %v414
    %v417 = vmul.f32 %v316, %v414
    %v418 = vmul.f32 %v319, %v414
    %v419 = vmul.f32 %v322, %v414
    %v420 = vmul.f32 %v325, %v414
    %v421 = vmul.f32 %v328, %v414
    %v422 = vmul.f32 %v331, %v414
    %v423 = vadd.f32 %v242, %v416
    %v424 = vadd.f32 %v247, %v417
    %v425 = vadd.f32 %v252, %v418
    %v426 = vadd.f32 %v257, %v419
    %v427 = vadd.f32 %v262, %v420
    %v428 = vadd.f32 %v267, %v421
    %v429 = vadd.f32 %v272, %v422
    %v430 = vld [vmem:[%s4] sm:$0x1]
    %v432 = vlaneseq
    %v433 = vshrl.u32 %v432, 7
    %v434 = vsub.s32 0, %v433
    %v435 = vrot.slane %v430, %v434
    %v437 = vadd.f32 %v423, %v435
    %v438 = vadd.f32 %v424, %v435
    %v439 = vadd.f32 %v425, %v435
    %v440 = vadd.f32 %v426, %v435
    %v441 = vadd.f32 %v427, %v435
    %v442 = vadd.f32 %v428, %v435
    %v443 = vadd.f32 %v429, %v435
    %v444 = vxor.u32 %v437, 2147483648
    %v445 = vxor.u32 %v438, 2147483648
    %v446 = vxor.u32 %v439, 2147483648
    %v447 = vxor.u32 %v440, 2147483648
    %v448 = vxor.u32 %v441, 2147483648
    %v449 = vxor.u32 %v442, 2147483648
    %v450 = vxor.u32 %v443, 2147483648
    %v451 = vmul.f32 %v444, 1.442695
    %v452 = vpow.pop %v451
    %v453 = vmul.f32 %v445, 1.442695
    %v454 = vpow.pop %v453
    %v455 = vmul.f32 %v446, 1.442695
    %v456 = vpow.pop %v455
    %v457 = vmul.f32 %v447, 1.442695
    %v458 = vpow.pop %v457
    %v459 = vmul.f32 %v448, 1.442695
    %v460 = vpow.pop %v459
    %v461 = vmul.f32 %v449, 1.442695
    %v462 = vpow.pop %v461
    %v463 = vmul.f32 %v450, 1.442695
    %v464 = vpow.pop %v463
    %v465 = vadd.f32 %v452, 1.0
    %v466 = vadd.f32 %v454, 1.0
    %v467 = vadd.f32 %v456, 1.0
    %v468 = vadd.f32 %v458, 1.0
    %v469 = vadd.f32 %v460, 1.0
    %v470 = vadd.f32 %v462, 1.0
    %v471 = vadd.f32 %v464, 1.0
    %v472 = vrcp.pop %v465
    %v473 = vmul.f32 1.0, %v472
    %v474 = vrcp.pop %v466
    %v475 = vmul.f32 1.0, %v474
    %v476 = vrcp.pop %v467
    %v477 = vmul.f32 1.0, %v476
    %v478 = vrcp.pop %v468
    %v479 = vmul.f32 1.0, %v478
    %v480 = vrcp.pop %v469
    %v481 = vmul.f32 1.0, %v480
    %v482 = vrcp.pop %v470
    %v483 = vmul.f32 1.0, %v482
    %v484 = vrcp.pop %v471
    %v485 = vmul.f32 1.0, %v484
    %v486 = vmul.f32 %v437, %v473
    %v487 = vmul.f32 %v438, %v475
    %v488 = vmul.f32 %v439, %v477
    %v489 = vmul.f32 %v440, %v479
    %v490 = vmul.f32 %v441, %v481
    %v491 = vmul.f32 %v442, %v483
    %v492 = vmul.f32 %v443, %v485
    %v493 = vld [vmem:[%s5] sm:$0xff]
    %v494 = vld [vmem:[%s5 + $0x8] sm:$0xff]
    %v495 = vld [vmem:[%s5 + $0x10] sm:$0xff]
    %v496 = vld [vmem:[%s5 + $0x18] sm:$0xff]
    %v497 = vld [vmem:[%s6] sm:$0x1]
    %v499 = vlaneseq
    %v500 = vshrl.u32 %v499, 7
    %v501 = vsub.s32 0, %v500
    %v502 = vrot.slane %v497, %v501
    %vm504 = vcmask 261120
    %v506 = vsel %vm504, %v486, 0
    %v509 = vsel %vm504, %v487, 0
    %v512 = vsel %vm504, %v488, 0
    %v515 = vsel %vm504, %v489, 0
    %v518 = vsel %vm504, %v490, 0
    %v521 = vsel %vm504, %v491, 0
    %v524 = vsel %vm504, %v492, 0
    %526 = vmatprep.subr.mxu0 0.0
    %527 = vmatpush1.msra.mxu0 0.0
    %528 = vmatprep.subr.mxu0 0.0
    %529 = vmatpush1.msra.mxu0 0.0
    %530 = vmatprep.subr.mxu0 0.0
    %531 = vmatpush1.msra.mxu0 0.0
    %532 = vmatprep.subr.mxu0 0.0
    %533 = vmatpush1.msra.mxu0 0.0
    %534 = vmatprep.subr.mxu0 0.0
    %535 = vmatpush1.msra.mxu0 0.0
    %536 = vmatprep.subr.mxu0 0.0
    %537 = vmatpush1.msra.mxu0 0.0
    %538 = vmatprep.subr.mxu0 0.0
    %539 = vmatpush1.msra.mxu0 0.0
    %540 = vmatprep.subr.mxu0 0.0
    %541 = vmatpush1.msra.mxu0 0.0
    %542 = vmatprep.subr.mxu0 0.0
    %543 = vmatpush1.msra.mxu0 0.0
    %544 = vmatprep.subr.mxu0 0.0
    %545 = vmatpush1.msra.mxu0 0.0
    %546 = vmatprep.subr.mxu0 0.0
    %547 = vmatpush1.msra.mxu0 0.0
    %548 = vmatprep.subr.mxu0 0.0
    %549 = vmatpush1.msra.mxu0 0.0
    %550 = vmatprep.subr.mxu0 0.0
    %551 = vmatpush1.msra.mxu0 %v496
    %552 = vmatprep.subr.mxu0 0.0
    %553 = vmatpush1.msra.mxu0 %v495
    %554 = vmatprep.subr.mxu0 0.0
    %555 = vmatpush1.msra.mxu0 %v494
    %556 = vmatprep.subr.mxu0 0.0
    %557 = vmatpush1.msra.mxu0 %v493
    %558 = vmatprep.subr.mxu0 0.0
    %559 = vmatpush2.msra.mxu0 0.0
    %560 = vmatprep.subr.mxu0 0.0
    %561 = vmatpush2.msra.mxu0 0.0
    %562 = vmatprep.subr.mxu0 0.0
    %563 = vmatpush2.msra.mxu0 0.0
    %564 = vmatprep.subr.mxu0 0.0
    %565 = vmatpush2.msra.mxu0 0.0
    %566 = vmatprep.subr.mxu0 0.0
    %567 = vmatpush2.msra.mxu0 0.0
    %568 = vmatprep.subr.mxu0 0.0
    %569 = vmatpush2.msra.mxu0 0.0
    %570 = vmatprep.subr.mxu0 0.0
    %571 = vmatpush2.msra.mxu0 0.0
    %572 = vmatprep.subr.mxu0 0.0
    %573 = vmatpush2.msra.mxu0 0.0
    %574 = vmatprep.subr.mxu0 0.0
    %575 = vmatpush2.msra.mxu0 0.0
    %576 = vmatprep.subr.mxu0 0.0
    %577 = vmatpush2.msra.mxu0 0.0
    %578 = vmatprep.subr.mxu0 0.0
    %579 = vmatpush2.msra.mxu0 0.0
    %580 = vmatprep.subr.mxu0 0.0
    %581 = vmatpush2.msra.mxu0 0.0
    %582 = vmatprep.subr.mxu0 0.0
    %583 = vmatpush2.msra.mxu0 0.0
    %584 = vmatprep.subr.mxu0 0.0
    %585 = vmatpush2.msra.mxu0 0.0
    %586 = vmatprep.subr.mxu0 0.0
    %587 = vmatpush2.msra.mxu0 0.0
    %588 = vmatprep.subr.mxu0 0.0
    %589 = vmatpush2.msra.mxu0 0.0
    %590 = vmatprep.mubr.f32.mxu0 0.0
    %591 = vmatmul.mubr.f32.gmra.mxu0 %v506
    %v592 = vpop.f32.mrf.mxu0
    %v593 = vadd.f32 %v502, %v592
    %v594 = vpop.f32.mrf.mxu0
    %595 = vmatprep.mubr.f32.mxu0 0.0
    %596 = vmatmul.mubr.f32.gmra.mxu0 %v509
    %v597 = vpop.f32.mrf.mxu0
    %v598 = vadd.f32 %v502, %v597
    %v599 = vpop.f32.mrf.mxu0
    %600 = vmatprep.mubr.f32.mxu0 0.0
    %601 = vmatmul.mubr.f32.gmra.mxu0 %v512
    %v602 = vpop.f32.mrf.mxu0
    %v603 = vadd.f32 %v502, %v602
    %v604 = vpop.f32.mrf.mxu0
    %605 = vmatprep.mubr.f32.mxu0 0.0
    %606 = vmatmul.mubr.f32.gmra.mxu0 %v515
    %v607 = vpop.f32.mrf.mxu0
    %v608 = vadd.f32 %v502, %v607
    %v609 = vpop.f32.mrf.mxu0
    %610 = vmatprep.mubr.f32.mxu0 0.0
    %611 = vmatmul.mubr.f32.gmra.mxu0 %v518
    %v612 = vpop.f32.mrf.mxu0
    %v613 = vadd.f32 %v502, %v612
    %v614 = vpop.f32.mrf.mxu0
    %615 = vmatprep.mubr.f32.mxu0 0.0
    %616 = vmatmul.mubr.f32.gmra.mxu0 %v521
    %v617 = vpop.f32.mrf.mxu0
    %v618 = vadd.f32 %v502, %v617
    %v619 = vpop.f32.mrf.mxu0
    %620 = vmatprep.mubr.f32.mxu0 0.0
    %621 = vmatmul.mubr.f32.gmra.mxu0 %v524
    %v622 = vpop.f32.mrf.mxu0
    %v623 = vadd.f32 %v502, %v622
    %v624 = vpop.f32.mrf.mxu0
    %625 = vdwg.mxu0
    %v626 = vxor.u32 %v593, 2147483648
    %v627 = vxor.u32 %v598, 2147483648
    %v628 = vxor.u32 %v603, 2147483648
    %v629 = vxor.u32 %v608, 2147483648
    %v630 = vxor.u32 %v613, 2147483648
    %v631 = vxor.u32 %v618, 2147483648
    %v632 = vxor.u32 %v623, 2147483648
    %v633 = vmul.f32 %v626, 1.442695
    %v634 = vpow.pop %v633
    %v635 = vmul.f32 %v627, 1.442695
    %v636 = vpow.pop %v635
    %v637 = vmul.f32 %v628, 1.442695
    %v638 = vpow.pop %v637
    %v639 = vmul.f32 %v629, 1.442695
    %v640 = vpow.pop %v639
    %v641 = vmul.f32 %v630, 1.442695
    %v642 = vpow.pop %v641
    %v643 = vmul.f32 %v631, 1.442695
    %v644 = vpow.pop %v643
    %v645 = vmul.f32 %v632, 1.442695
    %v646 = vpow.pop %v645
    %v647 = vadd.f32 %v634, 1.0
    %v648 = vadd.f32 %v636, 1.0
    %v649 = vadd.f32 %v638, 1.0
    %v650 = vadd.f32 %v640, 1.0
    %v651 = vadd.f32 %v642, 1.0
    %v652 = vadd.f32 %v644, 1.0
    %v653 = vadd.f32 %v646, 1.0
    %v654 = vrcp.pop %v647
    %v655 = vmul.f32 1.0, %v654
    %v656 = vrcp.pop %v648
    %v657 = vmul.f32 1.0, %v656
    %v658 = vrcp.pop %v649
    %v659 = vmul.f32 1.0, %v658
    %v660 = vrcp.pop %v650
    %v661 = vmul.f32 1.0, %v660
    %v662 = vrcp.pop %v651
    %v663 = vmul.f32 1.0, %v662
    %v664 = vrcp.pop %v652
    %v665 = vmul.f32 1.0, %v664
    %v666 = vrcp.pop %v653
    %v667 = vmul.f32 1.0, %v666
    %v668 = vmul.f32 %v593, %v655
    %v669 = vmul.f32 %v598, %v657
    %v670 = vmul.f32 %v603, %v659
    %v671 = vmul.f32 %v608, %v661
    %v672 = vmul.f32 %v613, %v663
    %v673 = vmul.f32 %v618, %v665
    %v674 = vmul.f32 %v623, %v667
    %v675 = vld [vmem:[%s7] sm:$0xff]
    %v676 = vld [vmem:[%s7 + $0x8] sm:$0xff]
    %v677 = vld [vmem:[%s7 + $0x10] sm:$0xff]
    %v678 = vld [vmem:[%s7 + $0x18] sm:$0xff]
    %v679 = vld [vmem:[%s8] sm:$0x1]
    %v681 = vlaneseq
    %v682 = vshrl.u32 %v681, 7
    %v683 = vsub.s32 0, %v682
    %v684 = vrot.slane %v679, %v683
    %v687 = vsel %vm504, %v668, 0
    %v690 = vsel %vm504, %v669, 0
    %v693 = vsel %vm504, %v670, 0
    %v696 = vsel %vm504, %v671, 0
    %v699 = vsel %vm504, %v672, 0
    %v702 = vsel %vm504, %v673, 0
    %v705 = vsel %vm504, %v674, 0
    %707 = vmatprep.subr.mxu0 0.0
    %708 = vmatpush1.msra.mxu0 0.0
    %709 = vmatprep.subr.mxu0 0.0
    %710 = vmatpush1.msra.mxu0 0.0
    %711 = vmatprep.subr.mxu0 0.0
    %712 = vmatpush1.msra.mxu0 0.0
    %713 = vmatprep.subr.mxu0 0.0
    %714 = vmatpush1.msra.mxu0 0.0
    %715 = vmatprep.subr.mxu0 0.0
    %716 = vmatpush1.msra.mxu0 0.0
    %717 = vmatprep.subr.mxu0 0.0
    %718 = vmatpush1.msra.mxu0 0.0
    %719 = vmatprep.subr.mxu0 0.0
    %720 = vmatpush1.msra.mxu0 0.0
    %721 = vmatprep.subr.mxu0 0.0
    %722 = vmatpush1.msra.mxu0 0.0
    %723 = vmatprep.subr.mxu0 0.0
    %724 = vmatpush1.msra.mxu0 0.0
    %725 = vmatprep.subr.mxu0 0.0
    %726 = vmatpush1.msra.mxu0 0.0
    %727 = vmatprep.subr.mxu0 0.0
    %728 = vmatpush1.msra.mxu0 0.0
    %729 = vmatprep.subr.mxu0 0.0
    %730 = vmatpush1.msra.mxu0 0.0
    %731 = vmatprep.subr.mxu0 0.0
    %732 = vmatpush1.msra.mxu0 %v678
    %733 = vmatprep.subr.mxu0 0.0
    %734 = vmatpush1.msra.mxu0 %v677
    %735 = vmatprep.subr.mxu0 0.0
    %736 = vmatpush1.msra.mxu0 %v676
    %737 = vmatprep.subr.mxu0 0.0
    %738 = vmatpush1.msra.mxu0 %v675
    %739 = vmatprep.subr.mxu0 0.0
    %740 = vmatpush2.msra.mxu0 0.0
    %741 = vmatprep.subr.mxu0 0.0
    %742 = vmatpush2.msra.mxu0 0.0
    %743 = vmatprep.subr.mxu0 0.0
    %744 = vmatpush2.msra.mxu0 0.0
    %745 = vmatprep.subr.mxu0 0.0
    %746 = vmatpush2.msra.mxu0 0.0
    %747 = vmatprep.subr.mxu0 0.0
    %748 = vmatpush2.msra.mxu0 0.0
    %749 = vmatprep.subr.mxu0 0.0
    %750 = vmatpush2.msra.mxu0 0.0
    %751 = vmatprep.subr.mxu0 0.0
    %752 = vmatpush2.msra.mxu0 0.0
    %753 = vmatprep.subr.mxu0 0.0
    %754 = vmatpush2.msra.mxu0 0.0
    %755 = vmatprep.subr.mxu0 0.0
    %756 = vmatpush2.msra.mxu0 0.0
    %757 = vmatprep.subr.mxu0 0.0
    %758 = vmatpush2.msra.mxu0 0.0
    %759 = vmatprep.subr.mxu0 0.0
    %760 = vmatpush2.msra.mxu0 0.0
    %761 = vmatprep.subr.mxu0 0.0
    %762 = vmatpush2.msra.mxu0 0.0
    %763 = vmatprep.subr.mxu0 0.0
    %764 = vmatpush2.msra.mxu0 0.0
    %765 = vmatprep.subr.mxu0 0.0
    %766 = vmatpush2.msra.mxu0 0.0
    %767 = vmatprep.subr.mxu0 0.0
    %768 = vmatpush2.msra.mxu0 0.0
    %769 = vmatprep.subr.mxu0 0.0
    %770 = vmatpush2.msra.mxu0 0.0
    %771 = vmatprep.mubr.f32.mxu0 0.0
    %772 = vmatmul.mubr.f32.gmra.mxu0 %v687
    %v773 = vpop.f32.mrf.mxu0
    %v774 = vadd.f32 %v684, %v773
    %v775 = vpop.f32.mrf.mxu0
    %776 = vmatprep.mubr.f32.mxu0 0.0
    %777 = vmatmul.mubr.f32.gmra.mxu0 %v690
    %v778 = vpop.f32.mrf.mxu0
    %v779 = vadd.f32 %v684, %v778
    %v780 = vpop.f32.mrf.mxu0
    %781 = vmatprep.mubr.f32.mxu0 0.0
    %782 = vmatmul.mubr.f32.gmra.mxu0 %v693
    %v783 = vpop.f32.mrf.mxu0
    %v784 = vadd.f32 %v684, %v783
    %v785 = vpop.f32.mrf.mxu0
    %786 = vmatprep.mubr.f32.mxu0 0.0
    %787 = vmatmul.mubr.f32.gmra.mxu0 %v696
    %v788 = vpop.f32.mrf.mxu0
    %v789 = vadd.f32 %v684, %v788
    %v790 = vpop.f32.mrf.mxu0
    %791 = vmatprep.mubr.f32.mxu0 0.0
    %792 = vmatmul.mubr.f32.gmra.mxu0 %v699
    %v793 = vpop.f32.mrf.mxu0
    %v794 = vadd.f32 %v684, %v793
    %v795 = vpop.f32.mrf.mxu0
    %796 = vmatprep.mubr.f32.mxu0 0.0
    %797 = vmatmul.mubr.f32.gmra.mxu0 %v702
    %v798 = vpop.f32.mrf.mxu0
    %v799 = vadd.f32 %v684, %v798
    %v800 = vpop.f32.mrf.mxu0
    %801 = vmatprep.mubr.f32.mxu0 0.0
    %802 = vmatmul.mubr.f32.gmra.mxu0 %v705
    %v803 = vpop.f32.mrf.mxu0
    %v804 = vadd.f32 %v684, %v803
    %v805 = vpop.f32.mrf.mxu0
    %806 = vdwg.mxu0
    %v807 = vxor.u32 %v774, 2147483648
    %v808 = vxor.u32 %v779, 2147483648
    %v809 = vxor.u32 %v784, 2147483648
    %v810 = vxor.u32 %v789, 2147483648
    %v811 = vxor.u32 %v794, 2147483648
    %v812 = vxor.u32 %v799, 2147483648
    %v813 = vxor.u32 %v804, 2147483648
    %v814 = vmul.f32 %v807, 1.442695
    %v815 = vpow.pop %v814
    %v816 = vmul.f32 %v808, 1.442695
    %v817 = vpow.pop %v816
    %v818 = vmul.f32 %v809, 1.442695
    %v819 = vpow.pop %v818
    %v820 = vmul.f32 %v810, 1.442695
    %v821 = vpow.pop %v820
    %v822 = vmul.f32 %v811, 1.442695
    %v823 = vpow.pop %v822
    %v824 = vmul.f32 %v812, 1.442695
    %v825 = vpow.pop %v824
    %v826 = vmul.f32 %v813, 1.442695
    %v827 = vpow.pop %v826
    %v828 = vadd.f32 %v815, 1.0
    %v829 = vadd.f32 %v817, 1.0
    %v830 = vadd.f32 %v819, 1.0
    %v831 = vadd.f32 %v821, 1.0
    %v832 = vadd.f32 %v823, 1.0
    %v833 = vadd.f32 %v825, 1.0
    %v834 = vadd.f32 %v827, 1.0
    %v835 = vrcp.pop %v828
    %v836 = vmul.f32 1.0, %v835
    %v837 = vrcp.pop %v829
    %v838 = vmul.f32 1.0, %v837
    %v839 = vrcp.pop %v830
    %v840 = vmul.f32 1.0, %v839
    %v841 = vrcp.pop %v831
    %v842 = vmul.f32 1.0, %v841
    %v843 = vrcp.pop %v832
    %v844 = vmul.f32 1.0, %v843
    %v845 = vrcp.pop %v833
    %v846 = vmul.f32 1.0, %v845
    %v847 = vrcp.pop %v834
    %v848 = vmul.f32 1.0, %v847
    %v849 = vmul.f32 %v774, %v836
    %v850 = vmul.f32 %v779, %v838
    %v851 = vmul.f32 %v784, %v840
    %v852 = vmul.f32 %v789, %v842
    %v853 = vmul.f32 %v794, %v844
    %v854 = vmul.f32 %v799, %v846
    %v855 = vmul.f32 %v804, %v848
    %v856 = vld [vmem:[%s9] sm:$0xff]
    %v857 = vld [vmem:[%s9 + $0x8] sm:$0xff]
    %v858 = vld [vmem:[%s9 + $0x10] sm:$0xff]
    %v859 = vld [vmem:[%s9 + $0x18] sm:$0xff]
    %v861 = vsel %vm504, %v849, 0
    %v864 = vsel %vm504, %v850, 0
    %v867 = vsel %vm504, %v851, 0
    %v870 = vsel %vm504, %v852, 0
    %v873 = vsel %vm504, %v853, 0
    %v876 = vsel %vm504, %v854, 0
    %v879 = vsel %vm504, %v855, 0
    %881 = vmatprep.subr.mxu0 0.0
    %882 = vmatpush1.msra.mxu0 0.0
    %883 = vmatprep.subr.mxu0 0.0
    %884 = vmatpush1.msra.mxu0 0.0
    %885 = vmatprep.subr.mxu0 0.0
    %886 = vmatpush1.msra.mxu0 0.0
    %887 = vmatprep.subr.mxu0 0.0
    %888 = vmatpush1.msra.mxu0 0.0
    %889 = vmatprep.subr.mxu0 0.0
    %890 = vmatpush1.msra.mxu0 0.0
    %891 = vmatprep.subr.mxu0 0.0
    %892 = vmatpush1.msra.mxu0 0.0
    %893 = vmatprep.subr.mxu0 0.0
    %894 = vmatpush1.msra.mxu0 0.0
    %895 = vmatprep.subr.mxu0 0.0
    %896 = vmatpush1.msra.mxu0 0.0
    %897 = vmatprep.subr.mxu0 0.0
    %898 = vmatpush1.msra.mxu0 0.0
    %899 = vmatprep.subr.mxu0 0.0
    %900 = vmatpush1.msra.mxu0 0.0
    %901 = vmatprep.subr.mxu0 0.0
    %902 = vmatpush1.msra.mxu0 0.0
    %903 = vmatprep.subr.mxu0 0.0
    %904 = vmatpush1.msra.mxu0 0.0
    %905 = vmatprep.subr.mxu0 0.0
    %906 = vmatpush1.msra.mxu0 %v859
    %907 = vmatprep.subr.mxu0 0.0
    %908 = vmatpush1.msra.mxu0 %v858
    %909 = vmatprep.subr.mxu0 0.0
    %910 = vmatpush1.msra.mxu0 %v857
    %911 = vmatprep.subr.mxu0 0.0
    %912 = vmatpush1.msra.mxu0 %v856
    %913 = vmatprep.subr.mxu0 0.0
    %914 = vmatpush2.msra.mxu0 0.0
    %915 = vmatprep.subr.mxu0 0.0
    %916 = vmatpush2.msra.mxu0 0.0
    %917 = vmatprep.subr.mxu0 0.0
    %918 = vmatpush2.msra.mxu0 0.0
    %919 = vmatprep.subr.mxu0 0.0
    %920 = vmatpush2.msra.mxu0 0.0
    %921 = vmatprep.subr.mxu0 0.0
    %922 = vmatpush2.msra.mxu0 0.0
    %923 = vmatprep.subr.mxu0 0.0
    %924 = vmatpush2.msra.mxu0 0.0
    %925 = vmatprep.subr.mxu0 0.0
    %926 = vmatpush2.msra.mxu0 0.0
    %927 = vmatprep.subr.mxu0 0.0
    %928 = vmatpush2.msra.mxu0 0.0
    %929 = vmatprep.subr.mxu0 0.0
    %930 = vmatpush2.msra.mxu0 0.0
    %931 = vmatprep.subr.mxu0 0.0
    %932 = vmatpush2.msra.mxu0 0.0
    %933 = vmatprep.subr.mxu0 0.0
    %934 = vmatpush2.msra.mxu0 0.0
    %935 = vmatprep.subr.mxu0 0.0
    %936 = vmatpush2.msra.mxu0 0.0
    %937 = vmatprep.subr.mxu0 0.0
    %938 = vmatpush2.msra.mxu0 0.0
    %939 = vmatprep.subr.mxu0 0.0
    %940 = vmatpush2.msra.mxu0 0.0
    %941 = vmatprep.subr.mxu0 0.0
    %942 = vmatpush2.msra.mxu0 0.0
    %943 = vmatprep.subr.mxu0 0.0
    %944 = vmatpush2.msra.mxu0 0.0
    %945 = vmatprep.mubr.f32.mxu0 0.0
    %946 = vmatmul.mubr.f32.gmra.mxu0 %v861
    %v947 = vpop.f32.mrf.mxu0
    %v948 = vadd.f32 0.0, %v947
    %v949 = vpop.f32.mrf.mxu0
    %950 = vmatprep.mubr.f32.mxu0 0.0
    %951 = vmatmul.mubr.f32.gmra.mxu0 %v864
    %v952 = vpop.f32.mrf.mxu0
    %v953 = vadd.f32 0.0, %v952
    %v954 = vpop.f32.mrf.mxu0
    %955 = vmatprep.mubr.f32.mxu0 0.0
    %956 = vmatmul.mubr.f32.gmra.mxu0 %v867
    %v957 = vpop.f32.mrf.mxu0
    %v958 = vadd.f32 0.0, %v957
    %v959 = vpop.f32.mrf.mxu0
    %960 = vmatprep.mubr.f32.mxu0 0.0
    %961 = vmatmul.mubr.f32.gmra.mxu0 %v870
    %v962 = vpop.f32.mrf.mxu0
    %v963 = vadd.f32 0.0, %v962
    %v964 = vpop.f32.mrf.mxu0
    %965 = vmatprep.mubr.f32.mxu0 0.0
    %966 = vmatmul.mubr.f32.gmra.mxu0 %v873
    %v967 = vpop.f32.mrf.mxu0
    %v968 = vadd.f32 0.0, %v967
    %v969 = vpop.f32.mrf.mxu0
    %970 = vmatprep.mubr.f32.mxu0 0.0
    %971 = vmatmul.mubr.f32.gmra.mxu0 %v876
    %v972 = vpop.f32.mrf.mxu0
    %v973 = vadd.f32 0.0, %v972
    %v974 = vpop.f32.mrf.mxu0
    %975 = vmatprep.mubr.f32.mxu0 0.0
    %976 = vmatmul.mubr.f32.gmra.mxu0 %v879
    %v977 = vpop.f32.mrf.mxu0
    %v978 = vadd.f32 0.0, %v977
    %v979 = vpop.f32.mrf.mxu0
    %980 = vdwg.mxu0
    %982 = vset.pattern.permute.xlu0 0
    %983 = vperm.xlu0 %982, %v948
    %v984 = vpop.permute.xlu0 %983
    %987 = vset.pattern.permute.xlu0 0
    %988 = vperm.xlu0 %987, %v953
    %v989 = vpop.permute.xlu0 %988
    %992 = vset.pattern.permute.xlu0 0
    %993 = vperm.xlu0 %992, %v958
    %v994 = vpop.permute.xlu0 %993
    %997 = vset.pattern.permute.xlu0 0
    %998 = vperm.xlu0 %997, %v963
    %v999 = vpop.permute.xlu0 %998
    %1002 = vset.pattern.permute.xlu0 0
    %1003 = vperm.xlu0 %1002, %v968
    %v1004 = vpop.permute.xlu0 %1003
    %1007 = vset.pattern.permute.xlu0 0
    %1008 = vperm.xlu0 %1007, %v973
    %v1009 = vpop.permute.xlu0 %1008
    %1012 = vset.pattern.permute.xlu0 0
    %1013 = vperm.xlu0 %1012, %v978
    %v1014 = vpop.permute.xlu0 %1013
    %v1016 = vmul.f32 %v402, %v984
    %v1017 = vmul.f32 %v403, %v989
    %v1018 = vmul.f32 %v404, %v994
    %v1019 = vmul.f32 %v405, %v999
    %v1020 = vmul.f32 %v406, %v1004
    %v1021 = vmul.f32 %v407, %v1009
    %v1022 = vmul.f32 %v408, %v1014
    %v1023 = vsel %vm504, %v668, %v1016
    %v1024 = vsel %vm504, %v669, %v1017
    %v1025 = vsel %vm504, %v670, %v1018
    %v1026 = vsel %vm504, %v671, %v1019
    %v1027 = vsel %vm504, %v672, %v1020
    %v1028 = vsel %vm504, %v673, %v1021
    %v1029 = vsel %vm504, %v674, %v1022
    %v1030 = vld [vmem:[%s70] sm:$0x1]
    %v1031 = vlaneseq
    %v1032 = vshrl.u32 %v1031, 7
    %v1033 = vlaneseq
    %v1034 = vshrl.u32 %v1033, 7
    %v1035 = vsub.s32 0, %v1034
    %v1036 = vrot.slane %v1030, %v1035
    %vm1037 = vcmp.eq.s32.totalorder %v1032, %v1036
    %v1038 = vsel %vm1037, 1.0, 0.0
    %vm1039 = vcmask 457728
    %v1041 = vsel %vm1039, %v1038, 0
    %1043 = vmatprep.subr.mxu0 0.0
    %1044 = vmatpush1.msra.mxu0 0.0
    %1045 = vmatprep.subr.mxu0 0.0
    %1046 = vmatpush1.msra.mxu0 0.0
    %1047 = vmatprep.subr.mxu0 0.0
    %1048 = vmatpush1.msra.mxu0 0.0
    %1049 = vmatprep.subr.mxu0 0.0
    %1050 = vmatpush1.msra.mxu0 0.0
    %1051 = vmatprep.subr.mxu0 0.0
    %1052 = vmatpush1.msra.mxu0 0.0
    %1053 = vmatprep.subr.mxu0 0.0
    %1054 = vmatpush1.msra.mxu0 0.0
    %1055 = vmatprep.subr.mxu0 0.0
    %1056 = vmatpush1.msra.mxu0 0.0
    %1057 = vmatprep.subr.mxu0 0.0
    %1058 = vmatpush1.msra.mxu0 0.0
    %1059 = vmatprep.subr.mxu0 0.0
    %1060 = vmatpush1.msra.mxu0 0.0
    %1061 = vmatprep.subr.mxu0 0.0
    %1062 = vmatpush1.msra.mxu0 %v1029
    %1063 = vmatprep.subr.mxu0 0.0
    %1064 = vmatpush1.msra.mxu0 %v1028
    %1065 = vmatprep.subr.mxu0 0.0
    %1066 = vmatpush1.msra.mxu0 %v1027
    %1067 = vmatprep.subr.mxu0 0.0
    %1068 = vmatpush1.msra.mxu0 %v1026
    %1069 = vmatprep.subr.mxu0 0.0
    %1070 = vmatpush1.msra.mxu0 %v1025
    %1071 = vmatprep.subr.mxu0 0.0
    %1072 = vmatpush1.msra.mxu0 %v1024
    %1073 = vmatprep.subr.mxu0 0.0
    %1074 = vmatpush1.msra.mxu0 %v1023
    %1075 = vmatprep.subr.mxu0 0.0
    %1076 = vmatpush2.msra.mxu0 0.0
    %1077 = vmatprep.subr.mxu0 0.0
    %1078 = vmatpush2.msra.mxu0 0.0
    %1079 = vmatprep.subr.mxu0 0.0
    %1080 = vmatpush2.msra.mxu0 0.0
    %1081 = vmatprep.subr.mxu0 0.0
    %1082 = vmatpush2.msra.mxu0 0.0
    %1083 = vmatprep.subr.mxu0 0.0
    %1084 = vmatpush2.msra.mxu0 0.0
    %1085 = vmatprep.subr.mxu0 0.0
    %1086 = vmatpush2.msra.mxu0 0.0
    %1087 = vmatprep.subr.mxu0 0.0
    %1088 = vmatpush2.msra.mxu0 0.0
    %1089 = vmatprep.subr.mxu0 0.0
    %1090 = vmatpush2.msra.mxu0 0.0
    %1091 = vmatprep.subr.mxu0 0.0
    %1092 = vmatpush2.msra.mxu0 0.0
    %1093 = vmatprep.subr.mxu0 0.0
    %1094 = vmatpush2.msra.mxu0 0.0
    %1095 = vmatprep.subr.mxu0 0.0
    %1096 = vmatpush2.msra.mxu0 0.0
    %1097 = vmatprep.subr.mxu0 0.0
    %1098 = vmatpush2.msra.mxu0 0.0
    %1099 = vmatprep.subr.mxu0 0.0
    %1100 = vmatpush2.msra.mxu0 0.0
    %1101 = vmatprep.subr.mxu0 0.0
    %1102 = vmatpush2.msra.mxu0 0.0
    %1103 = vmatprep.subr.mxu0 0.0
    %1104 = vmatpush2.msra.mxu0 0.0
    %1105 = vmatprep.subr.mxu0 0.0
    %1106 = vmatpush2.msra.mxu0 0.0
    %1107 = vmatprep.mubr.f32.mxu0 0.0
    %1108 = vmatmul.mubr.f32.gmra.mxu0 %v1041
    %v1109 = vpop.f32.mrf.mxu0
    %v1110 = vadd.f32 0.0, %v1109
    %v1111 = vpop.f32.mrf.mxu0
    %1112 = vdwg.mxu0
    %p1113 = scmp.eq.s32.totalorder 0, 0
    // Predicated region
    $region42: #{tpu_custom_call.1} parent=1 // pred_check
      %p1114 = pneg %p1113
    $region43: #{tpu_custom_call.1} parent=1 // pred_check_branch
      %1116 = sbr.rel (%p1114) target = $region45
    $region44: #{tpu_custom_call.1} parent=1 // pred_region
      %vm1117 = vcmask 285696
      %1118 = vst.msk [vmem:[#allocation2] sm:$0xff] %vm1117, 0.0
    $region45: #{tpu_custom_call.1} parent=1 // pred_fallthru
      _
    %v1119 = vld [vmem:[#allocation2] sm:$0xff]
    %v1120 = vadd.f32 %v1119, %v1110
    %vm1121 = vcmask 285696
    %1122 = vst.msk [vmem:[#allocation2] sm:$0xff] %vm1121, %v1120
    // Predicated region
    $region46: #{tpu_custom_call.1} parent=1 // pred_check
      _
    $region47: #{tpu_custom_call.1} parent=1 // pred_check_branch
      %1124 = sbr.rel (0) target = $region49
    $region48: #{tpu_custom_call.1} parent=1 // pred_region
      %s1126 = ssub.s32 128, 128
      %1127 = vsyncadd [#allocation3], %s1126
      %s1129 = sshll.u32 [#allocation2], 4
      %s1130 = int_to_ptr.vmem [resolvable:$true] %s1129
      %1132 = dma.vmem_to_hbm [thread:$0]  %s1130, 128, %s10, [#allocation3]
    $region49: #{tpu_custom_call.1} parent=1 // pred_fallthru
      _
    // Predicated region
    $region50: #{tpu_custom_call.1} parent=1 // pred_check
      _
    $region51: #{tpu_custom_call.1} parent=1 // pred_check_branch
      %1134 = sbr.rel (0) target = $region53
    $region52: #{tpu_custom_call.1} parent=1 // pred_region
      %1135 = dma.done [#allocation3], 128
    $region53: #{tpu_custom_call.1} parent=1 // pred_fallthru
      _
    %1136 = vsyncpa [#allocation3], 1

</llo_original>
